<compile_context>
chip_gen: v6e
topology: v6e:2x2x1
jax: 0.10.0
libtpu: 0.0.40
codegen_flags: <defaults>
</compile_context>

<pallas_src>
import functools

import jax
import jax.numpy as jnp
from jax import lax
from jax.experimental import pallas as pl
from jax.experimental.pallas import tpu as pltpu


def _round_up(v, m):
    return (v + m - 1) // m * m


def _mlp_kernel(x_ref, w_ref, b_ref, o_ref):
    # x_ref: (tm, K)   w_ref: (Fp, K)   b_ref: (1, Fp)   o_ref: (tm, Fp)
    # Transposed-RHS matmul (contract last dims) -> no weight transpose in HBM.
    acc = lax.dot_general(
        x_ref[...],
        w_ref[...],
        dimension_numbers=(((1,), (1,)), ((), ())),
        preferred_element_type=jnp.float32,
    )
    acc = acc + b_ref[...].astype(jnp.float32)
    # Exact GELU (torch.nn.GELU default): 0.5 * x * (1 + erf(x / sqrt(2))),
    # computed on the f32 accumulator; cast only on the final store.
    inv_sqrt2 = jnp.float32(0.7071067811865476)
    gelu = 0.5 * acc * (1.0 + lax.erf(acc * inv_sqrt2))
    o_ref[...] = gelu.astype(o_ref.dtype)


@functools.partial(jax.jit, static_argnames=("tm",))
def mlp_forward(x, weight, bias, *, tm=512):
    """Forward pass of Mlp: GELU(x @ weight.T + bias).

    x:      (..., K) with K = 2 * features
    weight: (F, K)   PyTorch nn.Linear layout (out_features, in_features)
    bias:   (F,)
    """
    *lead, K = x.shape
    F, Kw = weight.shape
    assert Kw == K, f"weight in_features {Kw} != input last dim {K}"

    M = 1
    for d in lead:
        M *= d
    x2d = x.reshape(M, K)

    # Lane-dense output: pad the output-feature axis up to a multiple of 128 so
    # the output block stores are unmasked; padded columns are sliced off below.
    Fp = _round_up(F, 128)
    if Fp != F:
        weight = jnp.pad(weight, ((0, Fp - F), (0, 0)))
        bias = jnp.pad(bias, (0, Fp - F))
    b2d = bias.reshape(1, Fp)

    # Row tile: big enough to amortize per-step overhead, never bigger than the
    # (8-aligned) problem; ragged M is padded with zero rows and sliced off.
    tm_eff = min(tm, _round_up(M, 8))
    Mp = _round_up(M, tm_eff)
    if Mp != M:
        x2d = jnp.pad(x2d, ((0, Mp - M), (0, 0)))

    # VMEM budget: double-buffered x/out tiles + single-buffered weight & bias.
    io_bytes = jnp.dtype(x.dtype).itemsize
    w_bytes = jnp.dtype(weight.dtype).itemsize
    need = 2 * tm_eff * (K + Fp) * io_bytes + Fp * (K + 1) * w_bytes
    vmem_limit = int(min(max(2 * need, 32 * 1024 * 1024), 120 * 1024 * 1024))

    out = pl.pallas_call(
        _mlp_kernel,
        out_shape=jax.ShapeDtypeStruct((Mp, Fp), x.dtype),
        grid_spec=pltpu.PrefetchScalarGridSpec(
            num_scalar_prefetch=0,
            grid=(Mp // tm_eff,),
            in_specs=[
                pl.BlockSpec((tm_eff, K), lambda i: (i, 0)),
                # Weight/bias blocks never change across the grid: keep a single
                # resident VMEM buffer instead of double-buffering.
                pl.BlockSpec((Fp, K), lambda i: (0, 0),
                             pipeline_mode=pl.Buffered(1)),
                pl.BlockSpec((1, Fp), lambda i: (0, 0),
                             pipeline_mode=pl.Buffered(1)),
            ],
            out_specs=pl.BlockSpec((tm_eff, Fp), lambda i: (i, 0)),
        ),
        compiler_params=pltpu.CompilerParams(
            dimension_semantics=("parallel",),  # shards row tiles across v7x's 2 TCs
            vmem_limit_bytes=vmem_limit,
        ),
    )(x2d, weight, b2d)

    return out[:M, :F].reshape(*lead, F)


def _reference(x, weight, bias):
    y = jnp.einsum(
        "...k,fk->...f", x.astype(jnp.float32), weight.astype(jnp.float32)
    ) + bias.astype(jnp.float32)
    return 0.5 * y * (1.0 + lax.erf(y / jnp.sqrt(2.0)))


if __name__ == "__main__":
    key = jax.random.PRNGKey(0)
    k_x, k_w, k_b, k_x2, k_w2, k_b2 = jax.random.split(key, 6)

    # --- check 1: f32, features=64 (lane pad 64 -> 128), M=16 -----------------
    features = 64
    B, N = 2, 8
    K = features * 2

    x = jax.random.normal(k_x, (B, N, K), dtype=jnp.float32)
    weight = jax.random.normal(k_w, (features, K), dtype=jnp.float32) * 0.05
    bias = jax.random.normal(k_b, (features,), dtype=jnp.float32) * 0.01

    out = mlp_forward(x, weight, bias)
    jax.block_until_ready(out)
    ref = _reference(x, weight, bias)
    assert out.shape == (B, N, features)
    assert jnp.allclose(out, ref, atol=1e-5, rtol=1e-5), "f32 mismatch vs reference"

    # --- check 2: bf16 I/O (f32 accumulate), ragged M and lane padding --------
    features2 = 96                       # F=96  -> padded to 128 lanes
    B2, N2 = 3, 7                        # M=21  -> padded to the 24-row tile
    K2 = features2 * 2

    x2 = jax.random.normal(k_x2, (B2, N2, K2), dtype=jnp.float32).astype(jnp.bfloat16)
    w2 = (jax.random.normal(k_w2, (features2, K2), dtype=jnp.float32) * 0.05
          ).astype(jnp.bfloat16)
    b2 = (jax.random.normal(k_b2, (features2,), dtype=jnp.float32) * 0.01
          ).astype(jnp.bfloat16)

    out2 = mlp_forward(x2, w2, b2)
    jax.block_until_ready(out2)
    ref2 = _reference(x2, w2, b2)
    assert out2.shape == (B2, N2, features2)
    assert jnp.allclose(out2.astype(jnp.float32), ref2, atol=5e-2, rtol=5e-2), \
        "bf16 mismatch vs reference"

    print("KERNEL_OK")
</pallas_src>

<mosaic_0001>
module attributes {stable_mosaic.version = 11 : i64} {
  func.func @_mlp_kernel(%arg0: i32, %arg1: memref<16x128xf32, #tpu.memory_space<vmem>>, %arg2: memref<128x128xf32, #tpu.memory_space<vmem>>, %arg3: memref<1x128xf32, #tpu.memory_space<vmem>>, %arg4: memref<16x128xf32, #tpu.memory_space<vmem>>) attributes {dimension_semantics = [#tpu.dimension_semantics<parallel>], iteration_bounds = array<i64: 1>, scalar_prefetch = 0 : i64, scratch_operands = 0 : i64, tpu.core_type = #tpu.core_type<tc>, window_params = [{transform_indices = @transform_0, window_bounds = array<i64: 16, 128>}, {pipeline_mode = #tpu.pipeline_mode<synchronous>, transform_indices = @transform_1, window_bounds = array<i64: 128, 128>}, {pipeline_mode = #tpu.pipeline_mode<synchronous>, transform_indices = @transform_2, window_bounds = array<i64: 1, 128>}, {transform_indices = @transform_3, window_bounds = array<i64: 16, 128>}]} {
    %c0 = arith.constant 0 : index
    %c0_0 = arith.constant 0 : index
    %0 = vector.load %arg1[%c0, %c0_0] : memref<16x128xf32, #tpu.memory_space<vmem>>, vector<16x128xf32>
    %c0_1 = arith.constant 0 : index
    %c0_2 = arith.constant 0 : index
    %1 = vector.load %arg2[%c0_1, %c0_2] : memref<128x128xf32, #tpu.memory_space<vmem>>, vector<128x128xf32>
    %cst = arith.constant dense<0.000000e+00> : vector<16x128xf32>
    %2 = tpu.matmul %0, %1, %cst {dimension_numbers = #tpu.dot_dimension_numbers<[1], [1], [0], [0], [0, 0, 1, 0], [], []>} : vector<16x128xf32>, vector<128x128xf32>, vector<16x128xf32> -> vector<16x128xf32>
    %c0_3 = arith.constant 0 : index
    %c0_4 = arith.constant 0 : index
    %3 = vector.load %arg3[%c0_3, %c0_4] : memref<1x128xf32, #tpu.memory_space<vmem>>, vector<1x128xf32>
    %4 = vector.broadcast %3 : vector<1x128xf32> to vector<16x128xf32>
    %5 = arith.addf %2, %4 : vector<16x128xf32>
    %cst_5 = arith.constant 5.000000e-01 : f32
    %6 = vector.broadcast %cst_5 : f32 to vector<16x128xf32>
    %7 = arith.mulf %6, %5 : vector<16x128xf32>
    %cst_6 = arith.constant 0.707106769 : f32
    %8 = vector.broadcast %cst_6 : f32 to vector<16x128xf32>
    %9 = arith.mulf %5, %8 : vector<16x128xf32>
    %10 = math.erf %9 : vector<16x128xf32>
    %cst_7 = arith.constant 1.000000e+00 : f32
    %11 = vector.broadcast %cst_7 : f32 to vector<16x128xf32>
    %12 = arith.addf %11, %10 : vector<16x128xf32>
    %13 = arith.mulf %7, %12 : vector<16x128xf32>
    %c0_8 = arith.constant 0 : index
    %c0_9 = arith.constant 0 : index
    %14 = vector.load %arg4[%c0_8, %c0_9] : memref<16x128xf32, #tpu.memory_space<vmem>>, vector<16x128xf32>
    tpu.vector_store %arg4[%c0_8, %c0_9], %13 {strides = array<i32>} : memref<16x128xf32, #tpu.memory_space<vmem>>, vector<16x128xf32>,
    return
  }
  func.func @transform_0(%arg0: i32) -> (i32, i32) {
    %c0_i32 = arith.constant 0 : i32
    %c0_i32_0 = arith.constant 0 : i32
    return %arg0, %c0_i32 : i32, i32
  }
  func.func @transform_1(%arg0: i32) -> (i32, i32) {
    %c0_i32 = arith.constant 0 : i32
    %c0_i32_0 = arith.constant 0 : i32
    %c0_i32_1 = arith.constant 0 : i32
    return %c0_i32, %c0_i32_0 : i32, i32
  }
  func.func @transform_2(%arg0: i32) -> (i32, i32) {
    %c0_i32 = arith.constant 0 : i32
    %c0_i32_0 = arith.constant 0 : i32
    %c0_i32_1 = arith.constant 0 : i32
    return %c0_i32, %c0_i32_0 : i32, i32
  }
  func.func @transform_3(%arg0: i32) -> (i32, i32) {
    %c0_i32 = arith.constant 0 : i32
    %c0_i32_0 = arith.constant 0 : i32
    return %arg0, %c0_i32 : i32, i32
  }
}

</mosaic_0001>

<llo_original>
// kernel: mlp_forward.1
$region0: #{mlp_forward.1}
  #allocation0 [shape = 'u32[]', space=smem, size = 0x4, offset = 0x4, fixed_abs, tag = 'smem constant byte address 0x4 - core index']
  #allocation1 [shape = 'u32[144,128]{1,0:T(1,128)}', space=vmem, size = 0x12000, scoped, tag = 'internal scratch']
  %s0 = inlined_call_operand.vmem [shape: f32[16,128], index: 0, kind: input, shape index: {}]
  %s1 = inlined_call_operand.vmem [shape: f32[128,128], index: 1, kind: input, shape index: {}]
  %s2 = inlined_call_operand.vmem [shape: f32[1,128], index: 2, kind: input, shape index: {}]
  %s3 = inlined_call_operand.vmem [shape: f32[16,128], index: 3, kind: output, shape index: {}]
  %s4 = sld [smem:[#allocation0]]
  $region22: #{mlp_forward.1} parent=0
    _
  %s6 = ssub.s32 1, %s4
  %s7 = scalar_select 0, %s6, %s4
  // Predicated region
  $region2: #{mlp_forward.1} parent=0 // pred_check
    _
  $region3: #{mlp_forward.1} parent=0 // pred_check_branch
    %9 = sbr.rel (0) target = $region5
  $region4: #{mlp_forward.1} parent=0 // pred_region
    _
  $region5: #{mlp_forward.1} parent=0 // pred_fallthru
    _
  // Predicated region
  $region6: #{mlp_forward.1} parent=0 // pred_check
    _
  $region7: #{mlp_forward.1} parent=0 // pred_check_branch
    %11 = sbr.rel (0) target = $region9
  $region8: #{mlp_forward.1} parent=0 // pred_region
    _
  $region9: #{mlp_forward.1} parent=0 // pred_fallthru
    _
  // Predicated region
  $region10: #{mlp_forward.1} parent=0 // pred_check
    _
  $region11: #{mlp_forward.1} parent=0 // pred_check_branch
    %13 = sbr.rel (0) target = $region13
  $region12: #{mlp_forward.1} parent=0 // pred_region
    _
  $region13: #{mlp_forward.1} parent=0 // pred_fallthru
    _
  %v14 = vld [vmem:[%s0] sm:$0xff]
  %v15 = vld [vmem:[%s0 + $0x8] sm:$0xff]
  %v16 = vld [vmem:[%s1] sm:$0xff]
  %v17 = vld [vmem:[%s1 + $0x8] sm:$0xff]
  %v18 = vld [vmem:[%s1 + $0x10] sm:$0xff]
  %v19 = vld [vmem:[%s1 + $0x18] sm:$0xff]
  %v20 = vld [vmem:[%s1 + $0x20] sm:$0xff]
  %v21 = vld [vmem:[%s1 + $0x28] sm:$0xff]
  %v22 = vld [vmem:[%s1 + $0x30] sm:$0xff]
  %v23 = vld [vmem:[%s1 + $0x38] sm:$0xff]
  %v24 = vld [vmem:[%s1 + $0x40] sm:$0xff]
  %v25 = vld [vmem:[%s1 + $0x48] sm:$0xff]
  %v26 = vld [vmem:[%s1 + $0x50] sm:$0xff]
  %v27 = vld [vmem:[%s1 + $0x58] sm:$0xff]
  %v28 = vld [vmem:[%s1 + $0x60] sm:$0xff]
  %v29 = vld [vmem:[%s1 + $0x68] sm:$0xff]
  %v30 = vld [vmem:[%s1 + $0x70] sm:$0xff]
  %v31 = vld [vmem:[%s1 + $0x78] sm:$0xff]
  %v32 = vld [vmem:[%s2] sm:$0x1]
  %v34 = vlaneseq
  %v35 = vshrl.u32 %v34, 7
  %v36 = vsub.s32 0, %v35
  %v37 = vrot.slane %v32, %v36
  %39 = vmatprep.subr.mxu0 0.0
  %40 = vmatpush1.xpose.msra.mxu0 %v31
  %41 = vmatprep.subr.mxu0 0.0
  %42 = vmatpush1.xpose.msra.mxu0 %v30
  %43 = vmatprep.subr.mxu0 0.0
  %44 = vmatpush1.xpose.msra.mxu0 %v29
  %45 = vmatprep.subr.mxu0 0.0
  %46 = vmatpush1.xpose.msra.mxu0 %v28
  %47 = vmatprep.subr.mxu0 0.0
  %48 = vmatpush1.xpose.msra.mxu0 %v27
  %49 = vmatprep.subr.mxu0 0.0
  %50 = vmatpush1.xpose.msra.mxu0 %v26
  %51 = vmatprep.subr.mxu0 0.0
  %52 = vmatpush1.xpose.msra.mxu0 %v25
  %53 = vmatprep.subr.mxu0 0.0
  %54 = vmatpush1.xpose.msra.mxu0 %v24
  %55 = vmatprep.subr.mxu0 0.0
  %56 = vmatpush1.xpose.msra.mxu0 %v23
  %57 = vmatprep.subr.mxu0 0.0
  %58 = vmatpush1.xpose.msra.mxu0 %v22
  %59 = vmatprep.subr.mxu0 0.0
  %60 = vmatpush1.xpose.msra.mxu0 %v21
  %61 = vmatprep.subr.mxu0 0.0
  %62 = vmatpush1.xpose.msra.mxu0 %v20
  %63 = vmatprep.subr.mxu0 0.0
  %64 = vmatpush1.xpose.msra.mxu0 %v19
  %65 = vmatprep.subr.mxu0 0.0
  %66 = vmatpush1.xpose.msra.mxu0 %v18
  %67 = vmatprep.subr.mxu0 0.0
  %68 = vmatpush1.xpose.msra.mxu0 %v17
  %69 = vmatprep.subr.mxu0 0.0
  %70 = vmatpush1.xpose.msra.mxu0 %v16
  %71 = vmatprep.subr.mxu0 0.0
  %72 = vmatpush2.xpose.msra.mxu0 0.0
  %73 = vmatprep.subr.mxu0 0.0
  %74 = vmatpush2.xpose.msra.mxu0 0.0
  %75 = vmatprep.subr.mxu0 0.0
  %76 = vmatpush2.xpose.msra.mxu0 0.0
  %77 = vmatprep.subr.mxu0 0.0
  %78 = vmatpush2.xpose.msra.mxu0 0.0
  %79 = vmatprep.subr.mxu0 0.0
  %80 = vmatpush2.xpose.msra.mxu0 0.0
  %81 = vmatprep.subr.mxu0 0.0
  %82 = vmatpush2.xpose.msra.mxu0 0.0
  %83 = vmatprep.subr.mxu0 0.0
  %84 = vmatpush2.xpose.msra.mxu0 0.0
  %85 = vmatprep.subr.mxu0 0.0
  %86 = vmatpush2.xpose.msra.mxu0 0.0
  %87 = vmatprep.subr.mxu0 0.0
  %88 = vmatpush2.xpose.msra.mxu0 0.0
  %89 = vmatprep.subr.mxu0 0.0
  %90 = vmatpush2.xpose.msra.mxu0 0.0
  %91 = vmatprep.subr.mxu0 0.0
  %92 = vmatpush2.xpose.msra.mxu0 0.0
  %93 = vmatprep.subr.mxu0 0.0
  %94 = vmatpush2.xpose.msra.mxu0 0.0
  %95 = vmatprep.subr.mxu0 0.0
  %96 = vmatpush2.xpose.msra.mxu0 0.0
  %97 = vmatprep.subr.mxu0 0.0
  %98 = vmatpush2.xpose.msra.mxu0 0.0
  %99 = vmatprep.subr.mxu0 0.0
  %100 = vmatpush2.xpose.msra.mxu0 0.0
  %101 = vmatprep.subr.mxu0 0.0
  %102 = vmatpush2.xpose.msra.mxu0 0.0
  %103 = vmatprep.mubr.f32.mxu0 0.0
  %104 = vmatmul.mubr.f32.gmra.mxu0 %v14
  %v105 = vpop.f32.mrf.mxu0
  %v106 = vadd.f32 %v37, %v105
  %v107 = vpop.f32.mrf.mxu0
  %108 = vmatprep.mubr.f32.mxu0 0.0
  %109 = vmatmul.mubr.f32.gmra.mxu0 %v15
  %v110 = vpop.f32.mrf.mxu0
  %v111 = vadd.f32 %v37, %v110
  %v112 = vpop.f32.mrf.mxu0
  %113 = vdwg.mxu0
  %v114 = vmul.f32 %v106, 0.5
  %v115 = vmul.f32 %v111, 0.5
  %v116 = vmul.f32 %v106, 0.70710677
  %v117 = vmul.f32 %v111, 0.70710677
  %v118 = verf.f32.pop %v116
  %v119 = verf.f32.pop %v117
  %v120 = vadd.f32 %v118, 1.0
  %v121 = vadd.f32 %v119, 1.0
  %v122 = vmul.f32 %v114, %v120
  %v123 = vmul.f32 %v115, %v121
  %124 = vst [vmem:[%s3] sm:$0xff] %v122
  %125 = vst [vmem:[%s3 + $0x8] sm:$0xff] %v123
  // Predicated region
  $region14: #{mlp_forward.1} parent=0 // pred_check
    _
  $region15: #{mlp_forward.1} parent=0 // pred_check_branch
    %127 = sbr.rel (0) target = $region17
  $region16: #{mlp_forward.1} parent=0 // pred_region
    _
  $region17: #{mlp_forward.1} parent=0 // pred_fallthru
    _
  // Predicated region
  $region18: #{mlp_forward.1} parent=0 // pred_check
    _
  $region19: #{mlp_forward.1} parent=0 // pred_check_branch
    %129 = sbr.rel (0) target = $region21
  $region20: #{mlp_forward.1} parent=0 // pred_region
    _
  $region21: #{mlp_forward.1} parent=0 // pred_fallthru
    _

</llo_original>
